<compile_context>
chip_gen: v6e
topology: v6e:2x2x1
jax: 0.10.0
libtpu: 0.0.40
codegen_flags: <defaults>
</compile_context>

<pallas_src>
import math

import jax
import jax.numpy as jnp
from jax import lax
from jax.experimental import pallas as pl
from jax.experimental.pallas import tpu as pltpu

# ---- MarginDistill hyper-parameters (the **kwargs of __init__) ----
MARGIN_S = 64.0          # kwargs['margin_s']
MARGIN_M = 0.5           # kwargs['margin_m'] (forward() overwrites self.m with cal_m)
EASY_MARGIN = False      # kwargs['easy_margin']
M_MAX = 0.5
M_MIN = 0.2

assert MARGIN_S > 0.0
assert MARGIN_M >= 0.0
assert MARGIN_M < math.pi / 2

_NORM_EPS = 1e-12        # F.normalize default eps


def _round_up(x, m):
    return ((x + m - 1) // m) * m


def _l2_normalize(x):
    # Matches F.normalize(x, p=2, dim=-1): x / max(||x||, eps)
    # written as x * rsqrt(max(||x||^2, eps^2)) -> EUP rsqrt + VPU mul.
    sq = jnp.sum(x * x, axis=-1, keepdims=True)
    return x * lax.rsqrt(jnp.maximum(sq, _NORM_EPS * _NORM_EPS))


def margin_distill_kernel(emb_ref, lab_ref, trow_ref, swt_ref, out_ref):
    """One (B, TC) class tile of the margin logits.

    emb_ref  : (B, E)   f32  embeddings             (resident across the class grid)
    lab_ref  : (B, 1)   i32  labels                 (resident)
    trow_ref : (B, E)   f32  t_weight[label] rows   (resident)
    swt_ref  : (E, TC)  bf16 student-weight tile, pre-transposed (streamed)
    out_ref  : (B, TC)  f32  lane-dense output tile
    """
    b, tc = out_ref.shape

    emb_n = _l2_normalize(emb_ref[...].astype(jnp.float32))
    t_n = _l2_normalize(trow_ref[...].astype(jnp.float32))
    labels = lab_ref[...]                                        # (B, 1) int32

    # ---------------- cal_m ----------------
    # O(B*E): cheap enough to recompute per class tile, which keeps the class
    # grid axis carry-free (safe under "parallel" semantics / megacore).
    cos_loss = jnp.sum(emb_n * t_n, axis=-1, keepdims=True)      # (B, 1)
    d_max = jnp.max(cos_loss)   # matches PyTorch; unclamped (fragile if ~0)
    m = ((M_MAX - M_MIN) / d_max) * cos_loss + M_MIN             # (B, 1) == self.m
    cos_m = jnp.cos(m)
    sin_m = jnp.sin(m)
    th = -cos_m                 # cos(pi - m)
    mm = sin_m * m              # sin(pi - m) * m

    # ---------------- cosine for this class tile ----------------
    # Un-normalized bf16 MXU matmul in natural (M,K)x(K,N) orientation,
    # followed by a per-column rsqrt scale (no element-wise normalization of
    # the streamed tile).
    sw = swt_ref[...]                                            # (E, TC) bf16
    raw = lax.dot_general(
        emb_n.astype(jnp.bfloat16), sw,
        dimension_numbers=(((1,), (0,)), ((), ())),
        preferred_element_type=jnp.float32)                      # (B, TC) f32

    sw_f32 = sw.astype(jnp.float32)
    norm_sq = jnp.sum(sw_f32 * sw_f32, axis=0, keepdims=True)    # (1, TC) sublane reduce
    inv_norm = lax.rsqrt(jnp.maximum(norm_sq, _NORM_EPS * _NORM_EPS))
    cosine = raw * inv_norm     # zero-padded columns: raw == 0 -> stays 0 (no NaN)

    sine = jnp.sqrt(jnp.maximum(1.0 - cosine * cosine, 0.0))     # 1 - cos^2 <= 1 already
    phi = cosine * cos_m - sine * sin_m
    if EASY_MARGIN:
        phi = jnp.where(cosine > 0.0, phi, cosine)
    else:
        phi = jnp.where(cosine > th, phi, cosine - mm)

    # Boolean label mask for this tile's class range (no float one-hot blend).
    col = pl.program_id(0) * tc + lax.broadcasted_iota(jnp.int32, (b, tc), 1)
    out = jnp.where(labels == col, phi, cosine)
    out_ref[...] = (out * MARGIN_S).astype(out_ref.dtype)


def _choose_class_tile(num_class, emb_size, weight_itemsize, target_bytes=2 << 20):
    """Lane-dense class tile: ~2 MiB streamed weight per grid step, >= 2 steps."""
    c128 = _round_up(max(num_class, 1), 128)
    tc = max(128, (target_bytes // (emb_size * weight_itemsize)) // 128 * 128)
    tc = min(tc, c128)
    # v7x megacore: keep >= 2 grid steps whenever the class dim allows it so the
    # "parallel" class axis is actually split across both TensorCores.
    if c128 >= 256:
        tc = min(tc, max(128, (c128 // 2) // 128 * 128))
    return tc


def margin_distill(labels, embedd, t_weight, s_weight, *, class_tile=None):
    B, E = embedd.shape
    C = t_weight.shape[0]
    assert s_weight.shape == (C, E)

    labels = labels.astype(jnp.int32)
    embedd = embedd.astype(jnp.float32)

    # Teacher centers: direct O(B*E) row gather (wrapper glue); the full (C, E)
    # teacher weight never enters the kernel.
    t_rows = jnp.take(t_weight.astype(jnp.float32), labels, axis=0)      # (B, E)

    # Student weight: bf16 (halves the dominant HBM stream) and pre-transposed
    # to (E, C) so streamed tiles are already in MXU (K, N) orientation.
    swt = s_weight.astype(jnp.bfloat16).T                                # (E, C)

    # Pad batch to 16 rows (bf16 vregs pack (16, 128)); replicate row 0 so
    # max(cos_loss) and all real-row results are unchanged (sliced off below).
    b_pad = _round_up(max(B, 1), 16)
    if b_pad != B:
        rep = b_pad - B
        embedd = jnp.concatenate(
            [embedd, jnp.broadcast_to(embedd[:1], (rep, E))], axis=0)
        t_rows = jnp.concatenate(
            [t_rows, jnp.broadcast_to(t_rows[:1], (rep, E))], axis=0)
        labels = jnp.concatenate(
            [labels, jnp.broadcast_to(labels[:1], (rep,))], axis=0)
    lab2d = labels.reshape(b_pad, 1)

    w_itemsize = jnp.dtype(swt.dtype).itemsize
    if class_tile is None:
        tc = _choose_class_tile(C, E, w_itemsize)
    else:
        tc = max(128, min(_round_up(class_tile, 128), _round_up(C, 128)))
    c_pad = _round_up(C, tc)
    if c_pad != C:
        swt = jnp.pad(swt, ((0, 0), (0, c_pad - C)))

    grid = (c_pad // tc,)

    # VMEM budget: double-buffered streamed weight tile + its in-kernel f32
    # square temporaries + double-buffered output tile + (B, TC) f32
    # temporaries + small resident inputs.  Cap against real per-core capacity.
    vmem_needed = (2 * E * tc * w_itemsize
                   + 2 * E * tc * 4
                   + 2 * b_pad * tc * 4
                   + 4 * b_pad * tc * 4
                   + 3 * b_pad * max(E, 128) * 4)
    try:
        vmem_cap = int(pltpu.get_tpu_info().vmem_capacity_bytes)
    except Exception:
        vmem_cap = 64 << 20   # v7x per-TC capacity (most conservative)
    vmem_limit = int(min(int(0.75 * vmem_cap), max(2 * vmem_needed, 16 << 20)))

    out = pl.pallas_call(
        margin_distill_kernel,
        out_shape=jax.ShapeDtypeStruct((b_pad, c_pad), jnp.float32),
        grid=grid,
        in_specs=[
            pl.BlockSpec((b_pad, E), lambda c: (0, 0)),   # embeddings   (resident)
            pl.BlockSpec((b_pad, 1), lambda c: (0, 0)),   # labels       (resident)
            pl.BlockSpec((b_pad, E), lambda c: (0, 0)),   # teacher rows (resident)
            pl.BlockSpec((E, tc), lambda c: (0, c)),      # student weight (streamed, bf16)
        ],
        out_specs=pl.BlockSpec((b_pad, tc), lambda c: (0, c)),
        compiler_params=pltpu.CompilerParams(
            dimension_semantics=("parallel",),
            vmem_limit_bytes=vmem_limit,
        ),
    )(embedd, lab2d, t_rows, swt)

    return out[:B, :C]


# ------------- pure-JAX reference (same math / numeric choices) -------------
def margin_distill_ref(labels, embedd, t_weight, s_weight):
    emb_n = _l2_normalize(embedd.astype(jnp.float32))
    tw_n = _l2_normalize(t_weight.astype(jnp.float32))
    C = t_weight.shape[0]
    one_hot = jax.nn.one_hot(labels, C, dtype=jnp.float32)
    teacher_centers = one_hot @ tw_n
    cos_loss = jnp.sum(emb_n * teacher_centers, -1, keepdims=True)
    m = ((M_MAX - M_MIN) / jnp.max(cos_loss)) * cos_loss + M_MIN
    th = jnp.cos(jnp.pi - m)
    mm = jnp.sin(jnp.pi - m) * m
    sw_bf = s_weight.astype(jnp.bfloat16)
    raw = jnp.dot(emb_n.astype(jnp.bfloat16), sw_bf.T,
                  preferred_element_type=jnp.float32)
    norm_sq = jnp.sum(sw_bf.astype(jnp.float32) ** 2, axis=-1)
    cosine = raw * lax.rsqrt(jnp.maximum(norm_sq, _NORM_EPS * _NORM_EPS))[None, :]
    sine = jnp.sqrt(jnp.maximum(1.0 - cosine * cosine, 0.0))
    phi = cosine * jnp.cos(m) - sine * jnp.sin(m)
    if EASY_MARGIN:
        phi = jnp.where(cosine > 0.0, phi, cosine)
    else:
        phi = jnp.where(cosine > th, phi, cosine - mm)
    return (one_hot * phi + (1.0 - one_hot) * cosine) * MARGIN_S


def xavier_uniform(key, shape):
    fan_out, fan_in = shape
    limit = math.sqrt(6.0 / (fan_in + fan_out))
    return jax.random.uniform(key, shape, jnp.float32, -limit, limit)


if __name__ == "__main__":
    B, Cimg, H, W = 8, 4, 16, 16          # image: NCHW
    EMB = 128                             # emb_size
    NUM_CLASS = 512                       # num_class (-> 2 class tiles of 256)

    key = jax.random.PRNGKey(0)
    k_img, k_lab, k_tw, k_sw, k_model = jax.random.split(key, 5)

    image = jax.random.normal(k_img, (B, Cimg, H, W), jnp.float32)
    label = jax.random.randint(k_lab, (B,), 0, NUM_CLASS, jnp.int32)

    # Parameters (deterministic xavier-uniform init, like nn.init.xavier_uniform_)
    t_weight = xavier_uniform(k_tw, (NUM_CLASS, EMB))
    s_weight = xavier_uniform(k_sw, (NUM_CLASS, EMB))

    # TODO(synk): self.model(image) backbone is external to the loss; a flatten+linear
    # projection stands in for it here (plain JAX glue, not part of the kernel).
    w_model = xavier_uniform(k_model, (EMB, Cimg * H * W)).T   # (Cimg*H*W, EMB)
    embedd = image.reshape(B, -1) @ w_model                    # (B, EMB)

    out = margin_distill(label, embedd, t_weight, s_weight)
    out = jax.block_until_ready(out)

    ref = margin_distill_ref(label, embedd, t_weight, s_weight)
    assert out.shape == (B, NUM_CLASS) and out.dtype == jnp.float32
    assert bool(jnp.all(jnp.isfinite(out))), "non-finite output"
    assert jnp.allclose(out, ref, atol=1e-2, rtol=1e-2), "mismatch vs reference"

    print("KERNEL_OK")
</pallas_src>

<mosaic_0001>
module attributes {stable_mosaic.version = 11 : i64} {
  func.func @margin_distill_kernel(%arg0: i32, %arg1: memref<16x128xf32, #tpu.memory_space<vmem>>, %arg2: memref<16x1xi32, #tpu.memory_space<vmem>>, %arg3: memref<16x128xf32, #tpu.memory_space<vmem>>, %arg4: memref<128x256xbf16, #tpu.memory_space<vmem>>, %arg5: memref<16x256xf32, #tpu.memory_space<vmem>>) attributes {dimension_semantics = [#tpu.dimension_semantics<parallel>], iteration_bounds = array<i64: 2>, scalar_prefetch = 0 : i64, scratch_operands = 0 : i64, tpu.core_type = #tpu.core_type<tc>, window_params = [{pipeline_mode = #tpu.pipeline_mode<synchronous>, transform_indices = @transform_0, window_bounds = array<i64: 16, 128>}, {pipeline_mode = #tpu.pipeline_mode<synchronous>, transform_indices = @transform_1, window_bounds = array<i64: 16, 1>}, {pipeline_mode = #tpu.pipeline_mode<synchronous>, transform_indices = @transform_2, window_bounds = array<i64: 16, 128>}, {transform_indices = @transform_3, window_bounds = array<i64: 128, 256>}, {transform_indices = @transform_4, window_bounds = array<i64: 16, 256>}]} {
    %c0 = arith.constant 0 : index
    %c0_0 = arith.constant 0 : index
    %0 = vector.load %arg1[%c0, %c0_0] : memref<16x128xf32, #tpu.memory_space<vmem>>, vector<16x128xf32>
    %1 = arith.mulf %0, %0 : vector<16x128xf32>
    %cst = arith.constant dense<0.000000e+00> : vector<16xf32>
    %2 = vector.multi_reduction <add>, %1, %cst [1] : vector<16x128xf32> to vector<16xf32>
    %3 = vector.shape_cast %2 : vector<16xf32> to vector<16x1xf32>
    %cst_1 = arith.constant 1.000000e-24 : f32
    %4 = vector.broadcast %cst_1 : f32 to vector<16x1xf32>
    %5 = arith.maximumf %3, %4 : vector<16x1xf32>
    %6 = math.rsqrt %5 : vector<16x1xf32>
    %7 = vector.broadcast %6 : vector<16x1xf32> to vector<16x128xf32>
    %8 = arith.mulf %0, %7 : vector<16x128xf32>
    %c0_2 = arith.constant 0 : index
    %c0_3 = arith.constant 0 : index
    %9 = vector.load %arg3[%c0_2, %c0_3] : memref<16x128xf32, #tpu.memory_space<vmem>>, vector<16x128xf32>
    %10 = arith.mulf %9, %9 : vector<16x128xf32>
    %cst_4 = arith.constant dense<0.000000e+00> : vector<16xf32>
    %11 = vector.multi_reduction <add>, %10, %cst_4 [1] : vector<16x128xf32> to vector<16xf32>
    %12 = vector.shape_cast %11 : vector<16xf32> to vector<16x1xf32>
    %cst_5 = arith.constant 1.000000e-24 : f32
    %13 = vector.broadcast %cst_5 : f32 to vector<16x1xf32>
    %14 = arith.maximumf %12, %13 : vector<16x1xf32>
    %15 = math.rsqrt %14 : vector<16x1xf32>
    %16 = vector.broadcast %15 : vector<16x1xf32> to vector<16x128xf32>
    %17 = arith.mulf %9, %16 : vector<16x128xf32>
    %c0_6 = arith.constant 0 : index
    %c0_7 = arith.constant 0 : index
    %18 = vector.load %arg2[%c0_6, %c0_7] : memref<16x1xi32, #tpu.memory_space<vmem>>, vector<16x1xi32>
    %19 = arith.mulf %8, %17 : vector<16x128xf32>
    %cst_8 = arith.constant dense<0.000000e+00> : vector<16xf32>
    %20 = vector.multi_reduction <add>, %19, %cst_8 [1] : vector<16x128xf32> to vector<16xf32>
    %21 = vector.shape_cast %20 : vector<16xf32> to vector<16x1xf32>
    %22 = vector.shape_cast %21 : vector<16x1xf32> to vector<1x16x1xf32>
    %cst_9 = arith.constant dense<0xFF800000> : vector<1xf32>
    %23 = vector.multi_reduction <maximumf>, %22, %cst_9 [1, 2] : vector<1x16x1xf32> to vector<1xf32>
    %24 = vector.shape_cast %23 : vector<1xf32> to vector<1x1x1xf32>
    %25 = vector.extract %24[0, 0, 0] : f32 from vector<1x1x1xf32>
    %cst_10 = arith.constant 3.000000e-01 : f32
    %26 = arith.divf %cst_10, %25 : f32
    %27 = vector.broadcast %26 : f32 to vector<16x1xf32>
    %28 = arith.mulf %27, %21 : vector<16x1xf32>
    %cst_11 = arith.constant 2.000000e-01 : f32
    %29 = vector.broadcast %cst_11 : f32 to vector<16x1xf32>
    %30 = arith.addf %28, %29 : vector<16x1xf32>
    %31 = math.cos %30 : vector<16x1xf32>
    %32 = math.sin %30 : vector<16x1xf32>
    %cst_12 = arith.constant 0.000000e+00 : f32
    %33 = vector.broadcast %cst_12 : f32 to vector<16x1xf32>
    %34 = arith.subf %33, %31 : vector<16x1xf32>
    %35 = arith.mulf %32, %30 : vector<16x1xf32>
    %c0_13 = arith.constant 0 : index
    %c0_14 = arith.constant 0 : index
    %36 = vector.load %arg4[%c0_13, %c0_14] : memref<128x256xbf16, #tpu.memory_space<vmem>>, vector<128x256xbf16>
    %37 = arith.truncf %8 : vector<16x128xf32> to vector<16x128xbf16>
    %cst_15 = arith.constant dense<0.000000e+00> : vector<16x256xf32>
    %38 = tpu.matmul %37, %36, %cst_15 {dimension_numbers = #tpu.dot_dimension_numbers<[1], [0], [0], [1], [0, 0, 1, 1], [], []>} : vector<16x128xbf16>, vector<128x256xbf16>, vector<16x256xf32> -> vector<16x256xf32>
    %39 = arith.extf %36 : vector<128x256xbf16> to vector<128x256xf32>
    %40 = arith.mulf %39, %39 : vector<128x256xf32>
    %cst_16 = arith.constant dense<0.000000e+00> : vector<256xf32>
    %41 = vector.multi_reduction <add>, %40, %cst_16 [0] : vector<128x256xf32> to vector<256xf32>
    %42 = vector.shape_cast %41 : vector<256xf32> to vector<1x256xf32>
    %cst_17 = arith.constant 1.000000e-24 : f32
    %43 = vector.broadcast %cst_17 : f32 to vector<1x256xf32>
    %44 = arith.maximumf %42, %43 : vector<1x256xf32>
    %45 = math.rsqrt %44 : vector<1x256xf32>
    %46 = vector.broadcast %45 : vector<1x256xf32> to vector<16x256xf32>
    %47 = arith.mulf %38, %46 : vector<16x256xf32>
    %48 = arith.mulf %47, %47 : vector<16x256xf32>
    %cst_18 = arith.constant 1.000000e+00 : f32
    %49 = vector.broadcast %cst_18 : f32 to vector<16x256xf32>
    %50 = arith.subf %49, %48 : vector<16x256xf32>
    %cst_19 = arith.constant 0.000000e+00 : f32
    %51 = vector.broadcast %cst_19 : f32 to vector<16x256xf32>
    %52 = arith.maximumf %50, %51 : vector<16x256xf32>
    %53 = math.sqrt %52 : vector<16x256xf32>
    %54 = vector.broadcast %31 : vector<16x1xf32> to vector<16x256xf32>
    %55 = arith.mulf %47, %54 : vector<16x256xf32>
    %56 = vector.broadcast %32 : vector<16x1xf32> to vector<16x256xf32>
    %57 = arith.mulf %53, %56 : vector<16x256xf32>
    %58 = arith.subf %55, %57 : vector<16x256xf32>
    %59 = vector.broadcast %34 : vector<16x1xf32> to vector<16x256xf32>
    %60 = arith.cmpf ogt, %47, %59 : vector<16x256xf32>
    %61 = vector.broadcast %35 : vector<16x1xf32> to vector<16x256xf32>
    %62 = arith.subf %47, %61 : vector<16x256xf32>
    %63 = arith.select %60, %58, %62 : vector<16x256xi1>, vector<16x256xf32>
    %c256_i32 = arith.constant 256 : i32
    %64 = arith.muli %arg0, %c256_i32 : i32
    %65 = tpu.iota {dimensions = array<i32: 1>} : vector<16x256xi32>
    %66 = vector.broadcast %64 : i32 to vector<16x256xi32>
    %67 = arith.addi %66, %65 : vector<16x256xi32>
    %68 = vector.broadcast %18 : vector<16x1xi32> to vector<16x256xi32>
    %69 = arith.cmpi eq, %68, %67 : vector<16x256xi32>
    %70 = arith.select %69, %63, %47 : vector<16x256xi1>, vector<16x256xf32>
    %cst_20 = arith.constant 6.400000e+01 : f32
    %71 = vector.broadcast %cst_20 : f32 to vector<16x256xf32>
    %72 = arith.mulf %70, %71 : vector<16x256xf32>
    %c0_21 = arith.constant 0 : index
    %c0_22 = arith.constant 0 : index
    %73 = vector.load %arg5[%c0_21, %c0_22] : memref<16x256xf32, #tpu.memory_space<vmem>>, vector<16x256xf32>
    tpu.vector_store %arg5[%c0_21, %c0_22], %72 {strides = array<i32>} : memref<16x256xf32, #tpu.memory_space<vmem>>, vector<16x256xf32>,
    return
  }
  func.func @transform_0(%arg0: i32) -> (i32, i32) {
    %c0_i32 = arith.constant 0 : i32
    %c0_i32_0 = arith.constant 0 : i32
    %c0_i32_1 = arith.constant 0 : i32
    return %c0_i32, %c0_i32_0 : i32, i32
  }
  func.func @transform_1(%arg0: i32) -> (i32, i32) {
    %c0_i32 = arith.constant 0 : i32
    %c0_i32_0 = arith.constant 0 : i32
    %c0_i32_1 = arith.constant 0 : i32
    return %c0_i32, %c0_i32_0 : i32, i32
  }
  func.func @transform_2(%arg0: i32) -> (i32, i32) {
    %c0_i32 = arith.constant 0 : i32
    %c0_i32_0 = arith.constant 0 : i32
    %c0_i32_1 = arith.constant 0 : i32
    return %c0_i32, %c0_i32_0 : i32, i32
  }
  func.func @transform_3(%arg0: i32) -> (i32, i32) {
    %c0_i32 = arith.constant 0 : i32
    %c0_i32_0 = arith.constant 0 : i32
    return %c0_i32, %arg0 : i32, i32
  }
  func.func @transform_4(%arg0: i32) -> (i32, i32) {
    %c0_i32 = arith.constant 0 : i32
    %c0_i32_0 = arith.constant 0 : i32
    return %c0_i32, %arg0 : i32, i32
  }
}

</mosaic_0001>

<llo_original>
// kernel: tpu_custom_call.1
$region0: #{tpu_custom_call.1}
  #allocation0 [shape = 'u32[]', space=smem, size = 0x4, offset = 0x4, fixed_abs, tag = 'smem constant byte address 0x4 - core index']
  #allocation1 [shape = 'u32[144,128]{1,0:T(1,128)}', space=vmem, size = 0x12000, scoped, tag = 'internal scratch']
  %s0 = inlined_call_operand.vmem [shape: f32[16,128], index: 0, kind: input, shape index: {}]
  %s1 = inlined_call_operand.vmem [shape: s32[16,1], index: 1, kind: input, shape index: {}]
  %s2 = inlined_call_operand.hbm [shape: f32[16,128], index: 2, kind: input, shape index: {}]
  %s3 = inlined_call_operand.hbm [shape: bf16[128,512], index: 3, kind: input, shape index: {}]
  %s4 = inlined_call_operand.hbm [shape: f32[16,512], index: 4, kind: output, shape index: {}]
  %s5 = sld [smem:[#allocation0]]
  $region57: #{tpu_custom_call.1} parent=0
    _
  %s7 = ssub.s32 1, %s5
  %s8 = scalar_select 0, %s7, %s5
  $region1: #{tpu_custom_call.1} parent=0
    #allocation2 [shape = 'u8[8192]{0}', space=vmem, size = 0x2000, scoped, tag = 'input window, operand 2, single buffered']
    #allocation3 [shape = 's32[2]{0}', space=sflag, size = 0x8, scoped, tag = 'scoped memory for tpu_custom_call.1']
    #allocation4 [shape = 's32[2]{0}', space=sflag, size = 0x8, scoped, tag = 'scoped memory for tpu_custom_call.1']
    #allocation5 [shape = 'u8[131072]{0}', space=vmem, size = 0x20000, scoped, tag = 'input window, operand 3']
    #allocation6 [shape = 's32[2]{0}', space=sflag, size = 0x8, scoped, tag = 'scoped memory for tpu_custom_call.1']
    #allocation7 [shape = 'u8[32768]{0}', space=vmem, size = 0x8000, scoped, tag = 'output window, operand 0']
    %9 = vsyncpa [#allocation3], 0
    %10 = vsyncpa [#allocation6], 0
    %s11 = scalar_lea.sflag [#allocation6], 1
    %12 = vsyncpa %s11, 0
    %13 = vsyncpa [#allocation4], 0
    %s14 = scalar_lea.sflag [#allocation4], 1
    %15 = vsyncpa %s14, 0
    loop: start=0, step=1, limit=4
    $region2: #{tpu_custom_call.1} parent=1 // loop_pre_header
      _
    $region3: #{tpu_custom_call.1} parent=1 // loop_header
      %s17 = sphi 0, %s21
      %p18 = scmp.ge.s32.totalorder %s17, 4
      %s25 = sphi 0, %s25
      %s27 = sphi 0, %s25
      %s28 = sphi 0, %s27
      %s42 = sphi 0, %s28
      %s46 = sphi 0, %s46
      %s48 = sphi 0, %s46
      %s49 = sphi 0, %s48
      %s63 = sphi 0, %s49
      %s67 = sphi 0, %s67
      %s69 = sphi 0, %s67
      %s70 = sphi 0, %s69
      %s84 = sphi 0, %s70
      %s90 = sphi 0, %s92
      %s93 = sphi 0, %s90
      %s94 = sphi 0, %s93
      %s110 = sphi 0, %s94
      %s116 = sphi 0, %s118
      %s119 = sphi 0, %s116
      %s120 = sphi 0, %s119
      %s136 = sphi 0, %s120
    $region4: #{tpu_custom_call.1} parent=1 // loop_header_branch
      %20 = sbr.rel (%p18) target = $region8
    $region5: #{tpu_custom_call.1} parent=1 // loop_body
      %s22 = ssub.s32 %s17, 1
      %s23 = ssub.s32 %s17, 2
      %s24 = sadd.s32 %s17, 1
      %s26 = sadd.s32 %s25, 1
      %p29 = scmp.eq.s32.totalorder %s17, 1
      %p30 = scmp.ne.s32.totalorder %s25, %s27
      %p31 = scmp.eq.s32.totalorder %s17, 0
      %p32 = por %p30, %p31
      %p33 = scmp.ne.s32.totalorder %s25, %s27
      %p34 = scmp.eq.s32.totalorder %s22, 1
      %p35 = por %p33, %p34
      %p36 = scmp.ne.s32.totalorder %s27, %s28
      %p37 = scmp.eq.s32.totalorder %s22, 0
      %p38 = por %p36, %p37
      %p39 = scmp.ne.s32.totalorder %s27, %s28
      %p40 = scmp.eq.s32.totalorder %s23, 1
      %p41 = por %p39, %p40
      %p43 = scmp.ne.s32.totalorder %s28, %s42
      %p44 = scmp.eq.s32.totalorder %s23, 0
      %p45 = por %p43, %p44
      %s47 = sadd.s32 %s46, 1
      %p50 = scmp.eq.s32.totalorder %s17, 1
      %p51 = scmp.ne.s32.totalorder %s46, %s48
      %p52 = scmp.eq.s32.totalorder %s17, 0
      %p53 = por %p51, %p52
      %p54 = scmp.ne.s32.totalorder %s46, %s48
      %p55 = scmp.eq.s32.totalorder %s22, 1
      %p56 = por %p54, %p55
      %p57 = scmp.ne.s32.totalorder %s48, %s49
      %p58 = scmp.eq.s32.totalorder %s22, 0
      %p59 = por %p57, %p58
      %p60 = scmp.ne.s32.totalorder %s48, %s49
      %p61 = scmp.eq.s32.totalorder %s23, 1
      %p62 = por %p60, %p61
      %p64 = scmp.ne.s32.totalorder %s49, %s63
      %p65 = scmp.eq.s32.totalorder %s23, 0
      %p66 = por %p64, %p65
      %s68 = sadd.s32 %s67, 1
      %p71 = scmp.eq.s32.totalorder %s17, 1
      %p72 = scmp.ne.s32.totalorder %s67, %s69
      %p73 = scmp.eq.s32.totalorder %s17, 0
      %p74 = por %p72, %p73
      %p75 = scmp.ne.s32.totalorder %s67, %s69
      %p76 = scmp.eq.s32.totalorder %s22, 1
      %p77 = por %p75, %p76
      %p78 = scmp.ne.s32.totalorder %s69, %s70
      %p79 = scmp.eq.s32.totalorder %s22, 0
      %p80 = por %p78, %p79
      %p81 = scmp.ne.s32.totalorder %s69, %s70
      %p82 = scmp.eq.s32.totalorder %s23, 1
      %p83 = por %p81, %p82
      %p85 = scmp.ne.s32.totalorder %s70, %s84
      %p86 = scmp.eq.s32.totalorder %s23, 0
      %p87 = por %p85, %p86
      %s88 = ssub.s32 %s17, %s24
      %p89 = scmp.eq.s32.totalorder %s88, 0
      %s91 = sadd.s32 %s90, 1
      %s92 = scalar_select %p89, %s90, %s91
      %p95 = pneg %p89
      %p96 = scmp.eq.s32.totalorder %s17, 1
      %p97 = por %p95, %p96
      %p98 = scmp.ne.s32.totalorder %s90, %s93
      %p99 = scmp.eq.s32.totalorder %s17, 0
      %p100 = por %p98, %p99
      %p101 = scmp.ne.s32.totalorder %s90, %s93
      %p102 = scmp.eq.s32.totalorder %s22, 1
      %p103 = por %p101, %p102
      %p104 = scmp.ne.s32.totalorder %s93, %s94
      %p105 = scmp.eq.s32.totalorder %s22, 0
      %p106 = por %p104, %p105
      %p107 = scmp.ne.s32.totalorder %s93, %s94
      %p108 = scmp.eq.s32.totalorder %s23, 1
      %p109 = por %p107, %p108
      %p111 = scmp.ne.s32.totalorder %s94, %s110
      %p112 = scmp.eq.s32.totalorder %s23, 0
      %p113 = por %p111, %p112
      %s114 = ssub.s32 %s17, %s24
      %p115 = scmp.eq.s32.totalorder %s114, 0
      %s117 = sadd.s32 %s116, 1
      %s118 = scalar_select %p115, %s116, %s117
      %p121 = pneg %p115
      %p122 = scmp.eq.s32.totalorder %s17, 1
      %p123 = por %p121, %p122
      %p124 = scmp.ne.s32.totalorder %s116, %s119
      %p125 = scmp.eq.s32.totalorder %s17, 0
      %p126 = por %p124, %p125
      %p127 = scmp.ne.s32.totalorder %s116, %s119
      %p128 = scmp.eq.s32.totalorder %s22, 1
      %p129 = por %p127, %p128
      %p130 = scmp.ne.s32.totalorder %s119, %s120
      %p131 = scmp.eq.s32.totalorder %s22, 0
      %p132 = por %p130, %p131
      %p133 = scmp.ne.s32.totalorder %s119, %s120
      %p134 = scmp.eq.s32.totalorder %s23, 1
      %p135 = por %p133, %p134
      %p137 = scmp.ne.s32.totalorder %s120, %s136
      %p138 = scmp.eq.s32.totalorder %s23, 0
      %p139 = por %p137, %p138
      %p140 = scmp.le.s32.totalorder 1, %s17
      %p141 = scmp.lt.s32.totalorder %s17, 3
      %p142 = pnand %p140, %p141
      %p143 = pneg %p142
      // Predicated region
      $region9: #{tpu_custom_call.1} parent=5 // pred_check
        _
      $region10: #{tpu_custom_call.1} parent=5 // pred_check_branch
        %145 = sbr.rel (%p142) target = $region12
      $region11: #{tpu_custom_call.1} parent=5 // pred_region
        %s146 = ssub.s32 %s17, 1
        // Predicated region
        $region13: #{tpu_custom_call.1} parent=11 // pred_check
          %p147 = pneg %p38
        $region14: #{tpu_custom_call.1} parent=11 // pred_check_branch
          %149 = sbr.rel (%p147) target = $region16
        $region15: #{tpu_custom_call.1} parent=11 // pred_region
          _
        $region16: #{tpu_custom_call.1} parent=11 // pred_fallthru
          _
        // Predicated region
        $region17: #{tpu_custom_call.1} parent=11 // pred_check
          %p150 = pneg %p59
        $region18: #{tpu_custom_call.1} parent=11 // pred_check_branch
          %152 = sbr.rel (%p150) target = $region20
        $region19: #{tpu_custom_call.1} parent=11 // pred_region
          _
        $region20: #{tpu_custom_call.1} parent=11 // pred_fallthru
          _
        // Predicated region
        $region21: #{tpu_custom_call.1} parent=11 // pred_check
          %p153 = pneg %p80
        $region22: #{tpu_custom_call.1} parent=11 // pred_check_branch
          %155 = sbr.rel (%p153) target = $region24
        $region23: #{tpu_custom_call.1} parent=11 // pred_region
          %s157 = ssub.s32 256, 256
          %158 = vsyncadd [#allocation3], %s157
          %s159 = sshll.u32 [#allocation2], 4
          %s160 = int_to_ptr.vmem [resolvable:$true] %s159
          %165 = dma.hbm_to_vmem [thread:$0]  %s2, 256, %s160, [#allocation3], 128, 128, 8
        $region24: #{tpu_custom_call.1} parent=11 // pred_fallthru
          _
      $region12: #{tpu_custom_call.1} parent=5 // pred_fallthru
        _
      %p166 = scmp.lt.s32.totalorder %s17, 2
      // Predicated region
      $region25: #{tpu_custom_call.1} parent=5 // pred_check
        %p167 = pneg %p166
      $region26: #{tpu_custom_call.1} parent=5 // pred_check_branch
        %169 = sbr.rel (%p167) target = $region28
      $region27: #{tpu_custom_call.1} parent=5 // pred_region
        // Predicated region
        $region29: #{tpu_custom_call.1} parent=27 // pred_check
          %p170 = pneg %p100
        $region30: #{tpu_custom_call.1} parent=27 // pred_check_branch
          %172 = sbr.rel (%p170) target = $region32
        $region31: #{tpu_custom_call.1} parent=27 // pred_region
          %s173 = sand.u32 %s90, 1
          %s174 = scalar_lea.sflag [#allocation6], %s173
          %s175 = sand.u32 %s90, 1
          %s176 = smul.addr %s175, 128
          %s177 = scalar_lea.vmem [#allocation5], %s176
          %s178 = smul.u32 2, %s17
          %s180 = ssub.s32 2048, 2048
          %181 = vsyncadd %s174, %s180
          %s182 = smul.addr %s178, 64
          %s183 = scalar_lea.hbm %s3, %s182
          %s184 = sshll.u32 %s177, 4
          %s185 = int_to_ptr.vmem [resolvable:$true] %s184
          %190 = dma.hbm_to_vmem [thread:$0]  %s183, 2048, %s185, %s174, 256, 128, 8
        $region32: #{tpu_custom_call.1} parent=27 // pred_fallthru
          _
      $region28: #{tpu_custom_call.1} parent=5 // pred_fallthru
        _
      %p191 = scmp.le.s32.totalorder 1, %s17
      %p192 = scmp.lt.s32.totalorder %s17, 3
      %p193 = pnand %p191, %p192
      %p194 = pneg %p193
      // Predicated region
      $region33: #{tpu_custom_call.1} parent=5 // pred_check
        _
      $region34: #{tpu_custom_call.1} parent=5 // pred_check_branch
        %196 = sbr.rel (%p193) target = $region36
      $region35: #{tpu_custom_call.1} parent=5 // pred_region
        %s197 = ssub.s32 %s17, 1
        // Predicated region
        $region37: #{tpu_custom_call.1} parent=35 // pred_check
          %p198 = pneg %p80
        $region38: #{tpu_custom_call.1} parent=35 // pred_check_branch
          %200 = sbr.rel (%p198) target = $region40
        $region39: #{tpu_custom_call.1} parent=35 // pred_region
          %201 = dma.done [#allocation3], 256
        $region40: #{tpu_custom_call.1} parent=35 // pred_fallthru
          _
        %s202 = sand.u32 %s93, 1
        %s203 = scalar_lea.sflag [#allocation6], %s202
        %s204 = sand.u32 %s93, 1
        %s205 = smul.addr %s204, 128
        %s206 = scalar_lea.vmem [#allocation5], %s205
        // Predicated region
        $region41: #{tpu_custom_call.1} parent=35 // pred_check
          %p207 = pneg %p106
        $region42: #{tpu_custom_call.1} parent=35 // pred_check_branch
          %209 = sbr.rel (%p207) target = $region44
        $region43: #{tpu_custom_call.1} parent=35 // pred_region
          %210 = dma.done %s203, 2048
        $region44: #{tpu_custom_call.1} parent=35 // pred_fallthru
          _
        %p211 = pneg %p38
        %p212 = pneg %p35
        %p213 = pneg %p59
        %p214 = pneg %p56
        %p215 = pneg %p80
        %p216 = pneg %p77
        %s217 = sand.u32 %s93, 1
        %s218 = scalar_lea.sflag [#allocation6], %s217
        %s219 = sand.u32 %s93, 1
        %s220 = smul.addr %s219, 128
        %s221 = scalar_lea.vmem [#allocation5], %s220
        %p222 = pneg %p106
        %p223 = pneg %p103
        %p224 = pneg %p132
        %p225 = pneg %p129
        %s226 = sand.u32 %s119, 1
        %s227 = scalar_lea.sflag [#allocation4], %s226
        %s228 = sand.u32 %s119, 1
        %s229 = smul.addr %s228, 32
        %s230 = scalar_lea.vmem [#allocation7], %s229
        %s231 = smul.u32 2, %s22
        %s232 = smul.u32 2, %s22
        %v234 = vld [vmem:[%s0] sm:$0xff]
        %v235 = vld [vmem:[%s0 + $0x8] sm:$0xff]
        %v236 = vmul.f32 %v234, %v234
        %v237 = vmul.f32 %v235, %v235
        %238 = vadd.xlane.f32.xlu0 %v236
        %v239 = vpop.xlane.xlu0 %238
        %240 = vadd.xlane.f32.xlu0 %v237
        %v241 = vpop.xlane.xlu0 %240
        %v242 = vmax.f32 %v239, 1e-24
        %v243 = vmax.f32 %v241, 1e-24
        %v244 = vrsqrt.pop %v242
        %v245 = vrsqrt.pop %v243
        %v246 = vmul.f32 %v234, %v244
        %v247 = vmul.f32 %v235, %v245
        %v248 = vld [vmem:[#allocation2] sm:$0xff]
        %v249 = vld [vmem:[#allocation2 + $0x8] sm:$0xff]
        %v250 = vmul.f32 %v248, %v248
        %v251 = vmul.f32 %v249, %v249
        %252 = vadd.xlane.f32.xlu0 %v250
        %v253 = vpop.xlane.xlu0 %252
        %254 = vadd.xlane.f32.xlu0 %v251
        %v255 = vpop.xlane.xlu0 %254
        %v256 = vmax.f32 %v253, 1e-24
        %v257 = vmax.f32 %v255, 1e-24
        %v258 = vrsqrt.pop %v256
        %v259 = vrsqrt.pop %v257
        %v260 = vmul.f32 %v248, %v258
        %v261 = vmul.f32 %v249, %v259
        %v262 = vld [vmem:[%s1] sm:$0xff]
        %v263 = vld [vmem:[%s1 + $0x8] sm:$0xff]
        %v264 = vmul.f32 %v246, %v260
        %v265 = vmul.f32 %v247, %v261
        %266 = vadd.xlane.f32.xlu0 %v264
        %v267 = vpop.xlane.xlu0 %266
        %268 = vadd.xlane.f32.xlu0 %v265
        %v269 = vpop.xlane.xlu0 %268
        %v270 = vmax.f32 %v267, %v269
        %v271 = vrot.slane %v270, 4
        %v272 = vmax.f32 %v270, %v271
        %v273 = vrot.slane %v272, 2
        %v274 = vmax.f32 %v272, %v273
        %v275 = vrot.slane %v274, 1
        %v276 = vmax.f32 %v274, %v275
        %s277 = vtos %v276
        %v278 = vstv %s277
        %v279 = vrcp.pop %v278
        %s280 = vtos %v279
        %s281 = smul.f32 0.3, %s280
        %v282 = vstv %s281
        %v283 = vmul.f32 %v282, %v267
        %v284 = vmul.f32 %v282, %v269
        %v285 = vadd.f32 %v283, 0.2
        %v286 = vadd.f32 %v284, 0.2
        %v287 = vand.u32 2147483647, %v285
        %vm288 = vcmp.le.f32.partialorder %v287, 0.7853982
        %vm289 = vcmp.lt.s32.totalorder %v285, 0
        %v290 = vand.u32 %v285, 2139095040
        %v291 = vshrl.u32 %v290, 23
        %v292 = vsub.s32 %v291, 127
        %v293 = vand.u32 2147483647, %v285
        %v294 = vand.u32 %v293, 8388607
        %v295 = vor.u32 %v294, 8388608
        %v296 = vsub.s32 0, %v295
        %v297 = vadd.s32 %v292, 1
        %vm298 = vcmp.gt.s32.totalorder %v297, 0
        %v299 = vsel %vm298, %v297, 0
        %v300 = vshrl.u32 %v299, 5
        %v301 = vand.u32 %v299, 31
        %v302 = vsub.s32 32, %v301
        %v303 = vshrl.u32 683565275, %v302
        %v304 = vshll.u32 683565275, %v301
        %v305 = vshrl.u32 2475754826, %v302
        %v306 = vor.u32 %v304, %v305
        %v307 = vshll.u32 2475754826, %v301
        %v308 = vshrl.u32 2131351028, %v302
        %v309 = vor.u32 %v307, %v308
        %v310 = vshll.u32 2131351028, %v301
        %v311 = vshrl.u32 2102212464, %v302
        %v312 = vor.u32 %v310, %v311
        %v313 = vshll.u32 2102212464, %v301
        %v314 = vshrl.u32 920167782, %v302
        %v315 = vor.u32 %v313, %v314
        %v316 = vshll.u32 920167782, %v301
        %v317 = vshrl.u32 1326507024, %v302
        %v318 = vor.u32 %v316, %v317
        %vm319 = vcmp.lt.s32.totalorder %v300, 1
        %vm320 = vcmp.lt.s32.totalorder %v300, 2
        %vm321 = vcmp.lt.s32.totalorder %v300, 3
        %vm322 = vcmp.lt.s32.totalorder %v300, 4
        %v323 = vsel %vm319, %v303, %v306
        %v324 = vsel %vm322, %v312, 2102212464
        %v325 = vsel %vm321, %v309, %v324
        %v326 = vsel %vm320, %v323, %v325
        %v327 = vsel %vm319, %v306, %v309
        %v328 = vsel %vm322, %v315, 920167782
        %v329 = vsel %vm321, %v312, %v328
        %v330 = vsel %vm320, %v327, %v329
        %v331 = vsel %vm319, %v309, %v312
        %v332 = vsel %vm322, %v318, 1326507024
        %v333 = vsel %vm321, %v315, %v332
        %v334 = vsel %vm320, %v331, %v333
        %v335 = vshll.u32 %v295, 8
        %v336 = vmul.u32.u64.compose %v335, %v334
        %v337 = vextract.low.u32 %v336
        %v338 = vextract.high.u32 %v336
        %v339 = vmul.u32.u64.compose %v335, %v330
        %v340 = vextract.low.u32 %v339
        %v341 = vextract.high.u32 %v339
        %v342 = vmul.u32 %v335, %v326
        %v343 = vadd.s32 %v338, %v340
        %vm344 = vc.u32 %v338, %v340
        %v345 = vadd.s32 %v341, 1
        %v346 = vsel %vm344, %v345, %v341
        %v347 = vadd.s32 %v342, %v346
        %v348 = vadd.s32 %v347, 536870912
        %v349 = vshrl.u32 %v348, 30
        %v350 = vshll.u32 %v349, 30
        %v351 = vsub.s32 %v347, %v350
        %vm352 = vcmp.lt.s32.totalorder %v351, 0
        %v353 = vsub.s32 0, %v351
        %v354 = vsel %vm352, %v353, %v351
        %v355 = vclz %v354
        %v356 = vsub.s32 %v355, 2
        %vm357 = vcmp.gt.s32.totalorder 0, %v356
        %v358 = vsel %vm357, 0, %v356
        %v359 = vsub.s32 32, %v358
        %v360 = vshll.u32 %v351, %v358
        %v361 = vshrl.u32 %v343, %v359
        %v362 = vor.u32 %v360, %v361
        %v363 = vsub.s32 4294967266, %v358
        %v364 = vadd.s32 %v363, 127
        %v365 = vshll.u32 %v364, 23
        %v366 = vor.u32 4788187, %v365
        %v367 = vand.u32 2147483647, %v366
        %v369 = vcvt.s32.f32 %v362
        %v370 = vmul.f32 %v369, %v367
        %v371 = vxor.u32 %v370, 2147483648
        %v372 = vsel %vm289, %v371, %v370
        %v373 = vsub.s32 4, %v349
        %v374 = vsel %vm289, %v373, %v349
        %v375 = vsel %vm288, %v285, %v372
        %v376 = vsel %vm288, 0, %v374
        %v377 = vcosq.f32.pop %v375
        %v378 = vsinq.f32.pop %v375
        %vm379 = vweird.f32 %v285
        %v380 = vand.u32 %v376, 3
        %vm381 = vcmp.lt.s32.totalorder %v380, 2
        %vm382 = vcmp.eq.s32.totalorder %v380, 0
        %v383 = vxor.u32 %v378, 2147483648
        %v384 = vsel %vm382, %v377, %v383
        %vm385 = vcmp.eq.s32.totalorder %v380, 2
        %v386 = vxor.u32 %v377, 2147483648
        %v387 = vsel %vm385, %v386, %v378
        %v388 = vsel %vm381, %v384, %v387
        %v389 = vsel %vm379, nan, %v388
        %v390 = vand.u32 2147483647, %v286
        %vm391 = vcmp.le.f32.partialorder %v390, 0.7853982
        %vm392 = vcmp.lt.s32.totalorder %v286, 0
        %v393 = vand.u32 %v286, 2139095040
        %v394 = vshrl.u32 %v393, 23
        %v395 = vsub.s32 %v394, 127
        %v396 = vand.u32 2147483647, %v286
        %v397 = vand.u32 %v396, 8388607
        %v398 = vor.u32 %v397, 8388608
        %v399 = vsub.s32 0, %v398
        %v400 = vadd.s32 %v395, 1
        %vm401 = vcmp.gt.s32.totalorder %v400, 0
        %v402 = vsel %vm401, %v400, 0
        %v403 = vshrl.u32 %v402, 5
        %v404 = vand.u32 %v402, 31
        %v405 = vsub.s32 32, %v404
        %v406 = vshrl.u32 683565275, %v405
        %v407 = vshll.u32 683565275, %v404
        %v408 = vshrl.u32 2475754826, %v405
        %v409 = vor.u32 %v407, %v408
        %v410 = vshll.u32 2475754826, %v404
        %v411 = vshrl.u32 2131351028, %v405
        %v412 = vor.u32 %v410, %v411
        %v413 = vshll.u32 2131351028, %v404
        %v414 = vshrl.u32 2102212464, %v405
        %v415 = vor.u32 %v413, %v414
        %v416 = vshll.u32 2102212464, %v404
        %v417 = vshrl.u32 920167782, %v405
        %v418 = vor.u32 %v416, %v417
        %v419 = vshll.u32 920167782, %v404
        %v420 = vshrl.u32 1326507024, %v405
        %v421 = vor.u32 %v419, %v420
        %vm422 = vcmp.lt.s32.totalorder %v403, 1
        %vm423 = vcmp.lt.s32.totalorder %v403, 2
        %vm424 = vcmp.lt.s32.totalorder %v403, 3
        %vm425 = vcmp.lt.s32.totalorder %v403, 4
        %v426 = vsel %vm422, %v406, %v409
        %v427 = vsel %vm425, %v415, 2102212464
        %v428 = vsel %vm424, %v412, %v427
        %v429 = vsel %vm423, %v426, %v428
        %v430 = vsel %vm422, %v409, %v412
        %v431 = vsel %vm425, %v418, 920167782
        %v432 = vsel %vm424, %v415, %v431
        %v433 = vsel %vm423, %v430, %v432
        %v434 = vsel %vm422, %v412, %v415
        %v435 = vsel %vm425, %v421, 1326507024
        %v436 = vsel %vm424, %v418, %v435
        %v437 = vsel %vm423, %v434, %v436
        %v438 = vshll.u32 %v398, 8
        %v439 = vmul.u32.u64.compose %v438, %v437
        %v440 = vextract.low.u32 %v439
        %v441 = vextract.high.u32 %v439
        %v442 = vmul.u32.u64.compose %v438, %v433
        %v443 = vextract.low.u32 %v442
        %v444 = vextract.high.u32 %v442
        %v445 = vmul.u32 %v438, %v429
        %v446 = vadd.s32 %v441, %v443
        %vm447 = vc.u32 %v441, %v443
        %v448 = vadd.s32 %v444, 1
        %v449 = vsel %vm447, %v448, %v444
        %v450 = vadd.s32 %v445, %v449
        %v451 = vadd.s32 %v450, 536870912
        %v452 = vshrl.u32 %v451, 30
        %v453 = vshll.u32 %v452, 30
        %v454 = vsub.s32 %v450, %v453
        %vm455 = vcmp.lt.s32.totalorder %v454, 0
        %v456 = vsub.s32 0, %v454
        %v457 = vsel %vm455, %v456, %v454
        %v458 = vclz %v457
        %v459 = vsub.s32 %v458, 2
        %vm460 = vcmp.gt.s32.totalorder 0, %v459
        %v461 = vsel %vm460, 0, %v459
        %v462 = vsub.s32 32, %v461
        %v463 = vshll.u32 %v454, %v461
        %v464 = vshrl.u32 %v446, %v462
        %v465 = vor.u32 %v463, %v464
        %v466 = vsub.s32 4294967266, %v461
        %v467 = vadd.s32 %v466, 127
        %v468 = vshll.u32 %v467, 23
        %v469 = vor.u32 4788187, %v468
        %v470 = vand.u32 2147483647, %v469
        %v472 = vcvt.s32.f32 %v465
        %v473 = vmul.f32 %v472, %v470
        %v474 = vxor.u32 %v473, 2147483648
        %v475 = vsel %vm392, %v474, %v473
        %v476 = vsub.s32 4, %v452
        %v477 = vsel %vm392, %v476, %v452
        %v478 = vsel %vm391, %v286, %v475
        %v479 = vsel %vm391, 0, %v477
        %v480 = vcosq.f32.pop %v478
        %v481 = vsinq.f32.pop %v478
        %vm482 = vweird.f32 %v286
        %v483 = vand.u32 %v479, 3
        %vm484 = vcmp.lt.s32.totalorder %v483, 2
        %vm485 = vcmp.eq.s32.totalorder %v483, 0
        %v486 = vxor.u32 %v481, 2147483648
        %v487 = vsel %vm485, %v480, %v486
        %vm488 = vcmp.eq.s32.totalorder %v483, 2
        %v489 = vxor.u32 %v480, 2147483648
        %v490 = vsel %vm488, %v489, %v481
        %v491 = vsel %vm484, %v487, %v490
        %v492 = vsel %vm482, nan, %v491
        %v493 = vand.u32 2147483647, %v285
        %vm494 = vcmp.le.f32.partialorder %v493, 0.7853982
        %vm495 = vcmp.lt.s32.totalorder %v285, 0
        %v496 = vand.u32 %v285, 2139095040
        %v497 = vshrl.u32 %v496, 23
        %v498 = vsub.s32 %v497, 127
        %v499 = vand.u32 2147483647, %v285
        %v500 = vand.u32 %v499, 8388607
        %v501 = vor.u32 %v500, 8388608
        %v502 = vsub.s32 0, %v501
        %v503 = vadd.s32 %v498, 1
        %vm504 = vcmp.gt.s32.totalorder %v503, 0
        %v505 = vsel %vm504, %v503, 0
        %v506 = vshrl.u32 %v505, 5
        %v507 = vand.u32 %v505, 31
        %v508 = vsub.s32 32, %v507
        %v509 = vshrl.u32 683565275, %v508
        %v510 = vshll.u32 683565275, %v507
        %v511 = vshrl.u32 2475754826, %v508
        %v512 = vor.u32 %v510, %v511
        %v513 = vshll.u32 2475754826, %v507
        %v514 = vshrl.u32 2131351028, %v508
        %v515 = vor.u32 %v513, %v514
        %v516 = vshll.u32 2131351028, %v507
        %v517 = vshrl.u32 2102212464, %v508
        %v518 = vor.u32 %v516, %v517
        %v519 = vshll.u32 2102212464, %v507
        %v520 = vshrl.u32 920167782, %v508
        %v521 = vor.u32 %v519, %v520
        %v522 = vshll.u32 920167782, %v507
        %v523 = vshrl.u32 1326507024, %v508
        %v524 = vor.u32 %v522, %v523
        %vm525 = vcmp.lt.s32.totalorder %v506, 1
        %vm526 = vcmp.lt.s32.totalorder %v506, 2
        %vm527 = vcmp.lt.s32.totalorder %v506, 3
        %vm528 = vcmp.lt.s32.totalorder %v506, 4
        %v529 = vsel %vm525, %v509, %v512
        %v530 = vsel %vm528, %v518, 2102212464
        %v531 = vsel %vm527, %v515, %v530
        %v532 = vsel %vm526, %v529, %v531
        %v533 = vsel %vm525, %v512, %v515
        %v534 = vsel %vm528, %v521, 920167782
        %v535 = vsel %vm527, %v518, %v534
        %v536 = vsel %vm526, %v533, %v535
        %v537 = vsel %vm525, %v515, %v518
        %v538 = vsel %vm528, %v524, 1326507024
        %v539 = vsel %vm527, %v521, %v538
        %v540 = vsel %vm526, %v537, %v539
        %v541 = vshll.u32 %v501, 8
        %v542 = vmul.u32.u64.compose %v541, %v540
        %v543 = vextract.low.u32 %v542
        %v544 = vextract.high.u32 %v542
        %v545 = vmul.u32.u64.compose %v541, %v536
        %v546 = vextract.low.u32 %v545
        %v547 = vextract.high.u32 %v545
        %v548 = vmul.u32 %v541, %v532
        %v549 = vadd.s32 %v544, %v546
        %vm550 = vc.u32 %v544, %v546
        %v551 = vadd.s32 %v547, 1
        %v552 = vsel %vm550, %v551, %v547
        %v553 = vadd.s32 %v548, %v552
        %v554 = vadd.s32 %v553, 536870912
        %v555 = vshrl.u32 %v554, 30
        %v556 = vshll.u32 %v555, 30
        %v557 = vsub.s32 %v553, %v556
        %vm558 = vcmp.lt.s32.totalorder %v557, 0
        %v559 = vsub.s32 0, %v557
        %v560 = vsel %vm558, %v559, %v557
        %v561 = vclz %v560
        %v562 = vsub.s32 %v561, 2
        %vm563 = vcmp.gt.s32.totalorder 0, %v562
        %v564 = vsel %vm563, 0, %v562
        %v565 = vsub.s32 32, %v564
        %v566 = vshll.u32 %v557, %v564
        %v567 = vshrl.u32 %v549, %v565
        %v568 = vor.u32 %v566, %v567
        %v569 = vsub.s32 4294967266, %v564
        %v570 = vadd.s32 %v569, 127
        %v571 = vshll.u32 %v570, 23
        %v572 = vor.u32 4788187, %v571
        %v573 = vand.u32 2147483647, %v572
        %v575 = vcvt.s32.f32 %v568
        %v576 = vmul.f32 %v575, %v573
        %v577 = vxor.u32 %v576, 2147483648
        %v578 = vsel %vm495, %v577, %v576
        %v579 = vsub.s32 4, %v555
        %v580 = vsel %vm495, %v579, %v555
        %v581 = vsel %vm494, %v285, %v578
        %v582 = vsel %vm494, 0, %v580
        %v583 = vcosq.f32.pop %v581
        %v584 = vsinq.f32.pop %v581
        %vm585 = vweird.f32 %v285
        %v586 = vadd.s32 %v582, 3
        %v587 = vand.u32 %v586, 3
        %vm588 = vcmp.lt.s32.totalorder %v587, 2
        %vm589 = vcmp.eq.s32.totalorder %v587, 0
        %v590 = vxor.u32 %v584, 2147483648
        %v591 = vsel %vm589, %v583, %v590
        %vm592 = vcmp.eq.s32.totalorder %v587, 2
        %v593 = vxor.u32 %v583, 2147483648
        %v594 = vsel %vm592, %v593, %v584
        %v595 = vsel %vm588, %v591, %v594
        %v596 = vsel %vm585, nan, %v595
        %v597 = vand.u32 2147483647, %v286
        %vm598 = vcmp.le.f32.partialorder %v597, 0.7853982
        %vm599 = vcmp.lt.s32.totalorder %v286, 0
        %v600 = vand.u32 %v286, 2139095040
        %v601 = vshrl.u32 %v600, 23
        %v602 = vsub.s32 %v601, 127
        %v603 = vand.u32 2147483647, %v286
        %v604 = vand.u32 %v603, 8388607
        %v605 = vor.u32 %v604, 8388608
        %v606 = vsub.s32 0, %v605
        %v607 = vadd.s32 %v602, 1
        %vm608 = vcmp.gt.s32.totalorder %v607, 0
        %v609 = vsel %vm608, %v607, 0
        %v610 = vshrl.u32 %v609, 5
        %v611 = vand.u32 %v609, 31
        %v612 = vsub.s32 32, %v611
        %v613 = vshrl.u32 683565275, %v612
        %v614 = vshll.u32 683565275, %v611
        %v615 = vshrl.u32 2475754826, %v612
        %v616 = vor.u32 %v614, %v615
        %v617 = vshll.u32 2475754826, %v611
        %v618 = vshrl.u32 2131351028, %v612
        %v619 = vor.u32 %v617, %v618
        %v620 = vshll.u32 2131351028, %v611
        %v621 = vshrl.u32 2102212464, %v612
        %v622 = vor.u32 %v620, %v621
        %v623 = vshll.u32 2102212464, %v611
        %v624 = vshrl.u32 920167782, %v612
        %v625 = vor.u32 %v623, %v624
        %v626 = vshll.u32 920167782, %v611
        %v627 = vshrl.u32 1326507024, %v612
        %v628 = vor.u32 %v626, %v627
        %vm629 = vcmp.lt.s32.totalorder %v610, 1
        %vm630 = vcmp.lt.s32.totalorder %v610, 2
        %vm631 = vcmp.lt.s32.totalorder %v610, 3
        %vm632 = vcmp.lt.s32.totalorder %v610, 4
        %v633 = vsel %vm629, %v613, %v616
        %v634 = vsel %vm632, %v622, 2102212464
        %v635 = vsel %vm631, %v619, %v634
        %v636 = vsel %vm630, %v633, %v635
        %v637 = vsel %vm629, %v616, %v619
        %v638 = vsel %vm632, %v625, 920167782
        %v639 = vsel %vm631, %v622, %v638
        %v640 = vsel %vm630, %v637, %v639
        %v641 = vsel %vm629, %v619, %v622
        %v642 = vsel %vm632, %v628, 1326507024
        %v643 = vsel %vm631, %v625, %v642
        %v644 = vsel %vm630, %v641, %v643
        %v645 = vshll.u32 %v605, 8
        %v646 = vmul.u32.u64.compose %v645, %v644
        %v647 = vextract.low.u32 %v646
        %v648 = vextract.high.u32 %v646
        %v649 = vmul.u32.u64.compose %v645, %v640
        %v650 = vextract.low.u32 %v649
        %v651 = vextract.high.u32 %v649
        %v652 = vmul.u32 %v645, %v636
        %v653 = vadd.s32 %v648, %v650
        %vm654 = vc.u32 %v648, %v650
        %v655 = vadd.s32 %v651, 1
        %v656 = vsel %vm654, %v655, %v651
        %v657 = vadd.s32 %v652, %v656
        %v658 = vadd.s32 %v657, 536870912
        %v659 = vshrl.u32 %v658, 30
        %v660 = vshll.u32 %v659, 30
        %v661 = vsub.s32 %v657, %v660
        %vm662 = vcmp.lt.s32.totalorder %v661, 0
        %v663 = vsub.s32 0, %v661
        %v664 = vsel %vm662, %v663, %v661
        %v665 = vclz %v664
        %v666 = vsub.s32 %v665, 2
        %vm667 = vcmp.gt.s32.totalorder 0, %v666
        %v668 = vsel %vm667, 0, %v666
        %v669 = vsub.s32 32, %v668
        %v670 = vshll.u32 %v661, %v668
        %v671 = vshrl.u32 %v653, %v669
        %v672 = vor.u32 %v670, %v671
        %v673 = vsub.s32 4294967266, %v668
        %v674 = vadd.s32 %v673, 127
        %v675 = vshll.u32 %v674, 23
        %v676 = vor.u32 4788187, %v675
        %v677 = vand.u32 2147483647, %v676
        %v679 = vcvt.s32.f32 %v672
        %v680 = vmul.f32 %v679, %v677
        %v681 = vxor.u32 %v680, 2147483648
        %v682 = vsel %vm599, %v681, %v680
        %v683 = vsub.s32 4, %v659
        %v684 = vsel %vm599, %v683, %v659
        %v685 = vsel %vm598, %v286, %v682
        %v686 = vsel %vm598, 0, %v684
        %v687 = vcosq.f32.pop %v685
        %v688 = vsinq.f32.pop %v685
        %vm689 = vweird.f32 %v286
        %v690 = vadd.s32 %v686, 3
        %v691 = vand.u32 %v690, 3
        %vm692 = vcmp.lt.s32.totalorder %v691, 2
        %vm693 = vcmp.eq.s32.totalorder %v691, 0
        %v694 = vxor.u32 %v688, 2147483648
        %v695 = vsel %vm693, %v687, %v694
        %vm696 = vcmp.eq.s32.totalorder %v691, 2
        %v697 = vxor.u32 %v687, 2147483648
        %v698 = vsel %vm696, %v697, %v688
        %v699 = vsel %vm692, %v695, %v698
        %v700 = vsel %vm689, nan, %v699
        %v701 = vsub.f32 0.0, %v389
        %v702 = vsub.f32 0.0, %v492
        %v703 = vmul.f32 %v596, %v285
        %v704 = vmul.f32 %v700, %v286
        %v705 = vld [vmem:[%s206] sm:$0xff]
        %v706 = vld [vmem:[%s206 + $0x8] sm:$0xff]
        %v707 = vld [vmem:[%s206 + $0x10] sm:$0xff]
        %v708 = vld [vmem:[%s206 + $0x18] sm:$0xff]
        %v709 = vld [vmem:[%s206 + $0x20] sm:$0xff]
        %v710 = vld [vmem:[%s206 + $0x28] sm:$0xff]
        %v711 = vld [vmem:[%s206 + $0x30] sm:$0xff]
        %v712 = vld [vmem:[%s206 + $0x38] sm:$0xff]
        %v713 = vld [vmem:[%s206 + $0x40] sm:$0xff]
        %v714 = vld [vmem:[%s206 + $0x48] sm:$0xff]
        %v715 = vld [vmem:[%s206 + $0x50] sm:$0xff]
        %v716 = vld [vmem:[%s206 + $0x58] sm:$0xff]
        %v717 = vld [vmem:[%s206 + $0x60] sm:$0xff]
        %v718 = vld [vmem:[%s206 + $0x68] sm:$0xff]
        %v719 = vld [vmem:[%s206 + $0x70] sm:$0xff]
        %v720 = vld [vmem:[%s206 + $0x78] sm:$0xff]
        %v721 = vpack.c.bf16 %v247, %v246
        %v738 = vunpack.c.l.b16 %v705
        %v739 = vunpack.c.h.b16 %v705
        %v740 = vunpack.c.l.b16 %v706
        %v741 = vunpack.c.h.b16 %v706
        %v742 = vunpack.c.l.b16 %v707
        %v743 = vunpack.c.h.b16 %v707
        %v744 = vunpack.c.l.b16 %v708
        %v745 = vunpack.c.h.b16 %v708
        %v746 = vunpack.c.l.b16 %v709
        %v747 = vunpack.c.h.b16 %v709
        %v748 = vunpack.c.l.b16 %v710
        %v749 = vunpack.c.h.b16 %v710
        %v750 = vunpack.c.l.b16 %v711
        %v751 = vunpack.c.h.b16 %v711
        %v752 = vunpack.c.l.b16 %v712
        %v753 = vunpack.c.h.b16 %v712
        %v754 = vunpack.c.l.b16 %v713
        %v755 = vunpack.c.h.b16 %v713
        %v756 = vunpack.c.l.b16 %v714
        %v757 = vunpack.c.h.b16 %v714
        %v758 = vunpack.c.l.b16 %v715
        %v759 = vunpack.c.h.b16 %v715
        %v760 = vunpack.c.l.b16 %v716
        %v761 = vunpack.c.h.b16 %v716
        %v762 = vunpack.c.l.b16 %v717
        %v763 = vunpack.c.h.b16 %v717
        %v764 = vunpack.c.l.b16 %v718
        %v765 = vunpack.c.h.b16 %v718
        %v766 = vunpack.c.l.b16 %v719
        %v767 = vunpack.c.h.b16 %v719
        %v768 = vunpack.c.l.b16 %v720
        %v769 = vunpack.c.h.b16 %v720
        %v770 = vpack.c.b16 %v740, %v738
        %v771 = vpack.c.b16 %v741, %v739
        %v772 = vpack.c.b16 %v744, %v742
        %v773 = vpack.c.b16 %v745, %v743
        %v774 = vpack.c.b16 %v748, %v746
        %v775 = vpack.c.b16 %v749, %v747
        %v776 = vpack.c.b16 %v752, %v750
        %v777 = vpack.c.b16 %v753, %v751
        %v778 = vpack.c.b16 %v756, %v754
        %v779 = vpack.c.b16 %v757, %v755
        %v780 = vpack.c.b16 %v760, %v758
        %v781 = vpack.c.b16 %v761, %v759
        %v782 = vpack.c.b16 %v764, %v762
        %v783 = vpack.c.b16 %v765, %v763
        %v784 = vpack.c.b16 %v768, %v766
        %v785 = vpack.c.b16 %v769, %v767
        %802 = vmatprep.subr.bf16.mxu0 %v785
        %803 = vmatpush1.bf16.msra.mxu0 %v784
        %804 = vmatprep.subr.bf16.mxu0 %v783
        %805 = vmatpush1.bf16.msra.mxu0 %v782
        %806 = vmatprep.subr.bf16.mxu0 %v781
        %807 = vmatpush1.bf16.msra.mxu0 %v780
        %808 = vmatprep.subr.bf16.mxu0 %v779
        %809 = vmatpush1.bf16.msra.mxu0 %v778
        %810 = vmatprep.subr.bf16.mxu0 %v777
        %811 = vmatpush1.bf16.msra.mxu0 %v776
        %812 = vmatprep.subr.bf16.mxu0 %v775
        %813 = vmatpush1.bf16.msra.mxu0 %v774
        %814 = vmatprep.subr.bf16.mxu0 %v773
        %815 = vmatpush1.bf16.msra.mxu0 %v772
        %816 = vmatprep.subr.bf16.mxu0 %v771
        %817 = vmatpush1.bf16.msra.mxu0 %v770
        %818 = vmatprep.subr.bf16.mxu0 0
        %819 = vmatpush2.bf16.msra.mxu0 0
        %820 = vmatprep.subr.bf16.mxu0 0
        %821 = vmatpush2.bf16.msra.mxu0 0
        %822 = vmatprep.subr.bf16.mxu0 0
        %823 = vmatpush2.bf16.msra.mxu0 0
        %824 = vmatprep.subr.bf16.mxu0 0
        %825 = vmatpush2.bf16.msra.mxu0 0
        %826 = vmatprep.subr.bf16.mxu0 0
        %827 = vmatpush2.bf16.msra.mxu0 0
        %828 = vmatprep.subr.bf16.mxu0 0
        %829 = vmatpush2.bf16.msra.mxu0 0
        %830 = vmatprep.subr.bf16.mxu0 0
        %831 = vmatpush2.bf16.msra.mxu0 0
        %832 = vmatprep.subr.bf16.mxu0 0
        %833 = vmatpush2.bf16.msra.mxu0 0
        %834 = vmatprep.mubr.bf16.mxu0 0
        %835 = vmatmul.mubr.bf16.gmra.mxu0 %v721
        %v836 = vpop.f32.mrf.mxu0
        %v837 = vadd.f32 0.0, %v836
        %v838 = vpop.f32.mrf.mxu0
        %v839 = vadd.f32 0.0, %v838
        %v840 = vpop.f32.mrf.mxu0
        %v841 = vadd.f32 0.0, %v840
        %v842 = vpop.f32.mrf.mxu0
        %v843 = vadd.f32 0.0, %v842
        %844 = vdwg.mxu0
        %v845 = vunpack.c.l.bf16 %v705
        %v846 = vunpack.c.h.bf16 %v705
        %v847 = vunpack.c.l.bf16 %v706
        %v848 = vunpack.c.h.bf16 %v706
        %v849 = vunpack.c.l.bf16 %v707
        %v850 = vunpack.c.h.bf16 %v707
        %v851 = vunpack.c.l.bf16 %v708
        %v852 = vunpack.c.h.bf16 %v708
        %v853 = vunpack.c.l.bf16 %v709
        %v854 = vunpack.c.h.bf16 %v709
        %v855 = vunpack.c.l.bf16 %v710
        %v856 = vunpack.c.h.bf16 %v710
        %v857 = vunpack.c.l.bf16 %v711
        %v858 = vunpack.c.h.bf16 %v711
        %v859 = vunpack.c.l.bf16 %v712
        %v860 = vunpack.c.h.bf16 %v712
        %v861 = vunpack.c.l.bf16 %v713
        %v862 = vunpack.c.h.bf16 %v713
        %v863 = vunpack.c.l.bf16 %v714
        %v864 = vunpack.c.h.bf16 %v714
        %v865 = vunpack.c.l.bf16 %v715
        %v866 = vunpack.c.h.bf16 %v715
        %v867 = vunpack.c.l.bf16 %v716
        %v868 = vunpack.c.h.bf16 %v716
        %v869 = vunpack.c.l.bf16 %v717
        %v870 = vunpack.c.h.bf16 %v717
        %v871 = vunpack.c.l.bf16 %v718
        %v872 = vunpack.c.h.bf16 %v718
        %v873 = vunpack.c.l.bf16 %v719
        %v874 = vunpack.c.h.bf16 %v719
        %v875 = vunpack.c.l.bf16 %v720
        %v876 = vunpack.c.h.bf16 %v720
        %v877 = vmul.f32 %v845, %v845
        %v878 = vmul.f32 %v846, %v846
        %v879 = vmul.f32 %v847, %v847
        %v880 = vmul.f32 %v848, %v848
        %v881 = vmul.f32 %v849, %v849
        %v882 = vmul.f32 %v850, %v850
        %v883 = vmul.f32 %v851, %v851
        %v884 = vmul.f32 %v852, %v852
        %v885 = vmul.f32 %v853, %v853
        %v886 = vmul.f32 %v854, %v854
        %v887 = vmul.f32 %v855, %v855
        %v888 = vmul.f32 %v856, %v856
        %v889 = vmul.f32 %v857, %v857
        %v890 = vmul.f32 %v858, %v858
        %v891 = vmul.f32 %v859, %v859
        %v892 = vmul.f32 %v860, %v860
        %v893 = vmul.f32 %v861, %v861
        %v894 = vmul.f32 %v862, %v862
        %v895 = vmul.f32 %v863, %v863
        %v896 = vmul.f32 %v864, %v864
        %v897 = vmul.f32 %v865, %v865
        %v898 = vmul.f32 %v866, %v866
        %v899 = vmul.f32 %v867, %v867
        %v900 = vmul.f32 %v868, %v868
        %v901 = vmul.f32 %v869, %v869
        %v902 = vmul.f32 %v870, %v870
        %v903 = vmul.f32 %v871, %v871
        %v904 = vmul.f32 %v872, %v872
        %v905 = vmul.f32 %v873, %v873
        %v906 = vmul.f32 %v874, %v874
        %v907 = vmul.f32 %v875, %v875
        %v908 = vmul.f32 %v876, %v876
        %v909 = vadd.f32 %v877, %v879
        %v910 = vadd.f32 %v909, %v881
        %v911 = vadd.f32 %v910, %v883
        %v912 = vadd.f32 %v911, %v885
        %v913 = vadd.f32 %v912, %v887
        %v914 = vadd.f32 %v913, %v889
        %v915 = vadd.f32 %v914, %v891
        %v916 = vadd.f32 %v915, %v893
        %v917 = vadd.f32 %v916, %v895
        %v918 = vadd.f32 %v917, %v897
        %v919 = vadd.f32 %v918, %v899
        %v920 = vadd.f32 %v919, %v901
        %v921 = vadd.f32 %v920, %v903
        %v922 = vadd.f32 %v921, %v905
        %v923 = vadd.f32 %v922, %v907
        %v924 = vrot.slane %v923, 4
        %v925 = vadd.f32 %v923, %v924
        %v926 = vrot.slane %v925, 2
        %v927 = vadd.f32 %v925, %v926
        %v928 = vrot.slane %v927, 1
        %v929 = vadd.f32 %v927, %v928
        %v930 = vadd.f32 %v878, %v880
        %v931 = vadd.f32 %v930, %v882
        %v932 = vadd.f32 %v931, %v884
        %v933 = vadd.f32 %v932, %v886
        %v934 = vadd.f32 %v933, %v888
        %v935 = vadd.f32 %v934, %v890
        %v936 = vadd.f32 %v935, %v892
        %v937 = vadd.f32 %v936, %v894
        %v938 = vadd.f32 %v937, %v896
        %v939 = vadd.f32 %v938, %v898
        %v940 = vadd.f32 %v939, %v900
        %v941 = vadd.f32 %v940, %v902
        %v942 = vadd.f32 %v941, %v904
        %v943 = vadd.f32 %v942, %v906
        %v944 = vadd.f32 %v943, %v908
        %v945 = vrot.slane %v944, 4
        %v946 = vadd.f32 %v944, %v945
        %v947 = vrot.slane %v946, 2
        %v948 = vadd.f32 %v946, %v947
        %v949 = vrot.slane %v948, 1
        %v950 = vadd.f32 %v948, %v949
        %v951 = vmax.f32 %v929, 1e-24
        %v952 = vmax.f32 %v950, 1e-24
        %v953 = vrsqrt.pop %v951
        %v954 = vrsqrt.pop %v952
        %v955 = vmul.f32 %v837, %v953
        %v956 = vmul.f32 %v839, %v954
        %v957 = vmul.f32 %v841, %v953
        %v958 = vmul.f32 %v843, %v954
        %v959 = vmul.f32 %v955, %v955
        %v960 = vmul.f32 %v956, %v956
        %v961 = vmul.f32 %v957, %v957
        %v962 = vmul.f32 %v958, %v958
        %v963 = vsub.f32 1.0, %v959
        %v964 = vsub.f32 1.0, %v960
        %v965 = vsub.f32 1.0, %v961
        %v966 = vsub.f32 1.0, %v962
        %v967 = vmax.f32 %v963, 0.0
        %v968 = vmax.f32 %v964, 0.0
        %v969 = vmax.f32 %v965, 0.0
        %v970 = vmax.f32 %v966, 0.0
        %v971 = vrsqrt.pop %v967
        %v972 = vmul.f32 %v967, %v971
        %vm973 = vcmp.eq.f32.partialorder %v967, inf
        %v974 = vsel %vm973, %v967, %v972
        %vm975 = vcmp.eq.f32.partialorder %v967, 0.0
        %v976 = vand.u32 %v967, 2147483648
        %v977 = vsel %vm975, %v976, %v974
        %v978 = vrsqrt.pop %v968
        %v979 = vmul.f32 %v968, %v978
        %vm980 = vcmp.eq.f32.partialorder %v968, inf
        %v981 = vsel %vm980, %v968, %v979
        %vm982 = vcmp.eq.f32.partialorder %v968, 0.0
        %v983 = vand.u32 %v968, 2147483648
        %v984 = vsel %vm982, %v983, %v981
        %v985 = vrsqrt.pop %v969
        %v986 = vmul.f32 %v969, %v985
        %vm987 = vcmp.eq.f32.partialorder %v969, inf
        %v988 = vsel %vm987, %v969, %v986
        %vm989 = vcmp.eq.f32.partialorder %v969, 0.0
        %v990 = vand.u32 %v969, 2147483648
        %v991 = vsel %vm989, %v990, %v988
        %v992 = vrsqrt.pop %v970
        %v993 = vmul.f32 %v970, %v992
        %vm994 = vcmp.eq.f32.partialorder %v970, inf
        %v995 = vsel %vm994, %v970, %v993
        %vm996 = vcmp.eq.f32.partialorder %v970, 0.0
        %v997 = vand.u32 %v970, 2147483648
        %v998 = vsel %vm996, %v997, %v995
        %v999 = vmul.f32 %v955, %v389
        %v1000 = vmul.f32 %v956, %v389
        %v1001 = vmul.f32 %v957, %v492
        %v1002 = vmul.f32 %v958, %v492
        %v1003 = vmul.f32 %v977, %v596
        %v1004 = vmul.f32 %v984, %v596
        %v1005 = vmul.f32 %v991, %v700
        %v1006 = vmul.f32 %v998, %v700
        %v1007 = vsub.f32 %v999, %v1003
        %v1008 = vsub.f32 %v1000, %v1004
        %v1009 = vsub.f32 %v1001, %v1005
        %v1010 = vsub.f32 %v1002, %v1006
        %vm1011 = vcmp.gt.f32.partialorder %v955, %v701
        %vm1012 = vcmp.gt.f32.partialorder %v956, %v701
        %vm1013 = vcmp.gt.f32.partialorder %v957, %v702
        %vm1014 = vcmp.gt.f32.partialorder %v958, %v702
        %v1015 = vsub.f32 %v955, %v703
        %v1016 = vsub.f32 %v956, %v703
        %v1017 = vsub.f32 %v957, %v704
        %v1018 = vsub.f32 %v958, %v704
        %v1019 = vsel %vm1011, %v1007, %v1015
        %v1020 = vsel %vm1012, %v1008, %v1016
        %v1021 = vsel %vm1013, %v1009, %v1017
        %v1022 = vsel %vm1014, %v1010, %v1018
        %s1023 = smul.u32 %s22, 256
        %v1024 = vlaneseq
        %v1025 = vand.u32 %v1024, 127
        %v1026 = vadd.s32 %v1025, 128
        %v1027 = vstv %s1023
        %v1028 = vadd.s32 %v1027, %v1025
        %v1029 = vadd.s32 %v1027, %v1026
        %1030 = vset.pattern.permute.xlu0 0
        %1031 = vperm.xlu0 %1030, %v262
        %v1032 = vpop.permute.xlu0 %1031
        %1033 = vset.pattern.permute.xlu0 0
        %1034 = vperm.xlu0 %1033, %v263
        %v1035 = vpop.permute.xlu0 %1034
        %vm1036 = vcmp.eq.s32.totalorder %v1032, %v1028
        %vm1037 = vcmp.eq.s32.totalorder %v1032, %v1029
        %vm1038 = vcmp.eq.s32.totalorder %v1035, %v1028
        %vm1039 = vcmp.eq.s32.totalorder %v1035, %v1029
        %v1040 = vsel %vm1036, %v1019, %v955
        %v1041 = vsel %vm1037, %v1020, %v956
        %v1042 = vsel %vm1038, %v1021, %v957
        %v1043 = vsel %vm1039, %v1022, %v958
        %v1044 = vmul.f32 %v1040, 64.0
        %v1045 = vmul.f32 %v1041, 64.0
        %v1046 = vmul.f32 %v1042, 64.0
        %v1047 = vmul.f32 %v1043, 64.0
        %1048 = vst [vmem:[%s230] sm:$0xff] %v1044
        %1049 = vst [vmem:[%s230 + $0x8] sm:$0xff] %v1045
        %1050 = vst [vmem:[%s230 + $0x10] sm:$0xff] %v1046
        %1051 = vst [vmem:[%s230 + $0x18] sm:$0xff] %v1047
        %s1052 = sand.u32 %s119, 1
        %s1053 = scalar_lea.sflag [#allocation4], %s1052
        %s1054 = sand.u32 %s119, 1
        %s1055 = smul.addr %s1054, 32
        %s1056 = scalar_lea.vmem [#allocation7], %s1055
        // Predicated region
        $region45: #{tpu_custom_call.1} parent=35 // pred_check
          %p1057 = pneg %p129
        $region46: #{tpu_custom_call.1} parent=35 // pred_check_branch
          %1059 = sbr.rel (%p1057) target = $region48
        $region47: #{tpu_custom_call.1} parent=35 // pred_region
          %s1060 = smul.u32 2, %s22
          %s1062 = ssub.s32 512, 512
          %1063 = vsyncadd %s1053, %s1062
          %s1064 = smul.addr %s1060, 128
          %s1065 = scalar_lea.hbm %s4, %s1064
          %s1066 = sshll.u32 %s1056, 4
          %s1067 = int_to_ptr.vmem [resolvable:$true] %s1066
          %1072 = dma.vmem_to_hbm [thread:$0]  %s1067, 512, %s1065, %s1053, 256, 512, 16
        $region48: #{tpu_custom_call.1} parent=35 // pred_fallthru
          _
      $region36: #{tpu_custom_call.1} parent=5 // pred_fallthru
        _
      %p1073 = scmp.le.s32.totalorder 2, %s17
      // Predicated region
      $region49: #{tpu_custom_call.1} parent=5 // pred_check
        %p1074 = pneg %p1073
      $region50: #{tpu_custom_call.1} parent=5 // pred_check_branch
        %1076 = sbr.rel (%p1074) target = $region52
      $region51: #{tpu_custom_call.1} parent=5 // pred_region
        %s1077 = ssub.s32 %s17, 2
        // Predicated region
        $region53: #{tpu_custom_call.1} parent=51 // pred_check
          %p1078 = pneg %p135
        $region54: #{tpu_custom_call.1} parent=51 // pred_check_branch
          %1080 = sbr.rel (%p1078) target = $region56
        $region55: #{tpu_custom_call.1} parent=51 // pred_region
          %s1081 = sand.u32 %s120, 1
          %s1082 = scalar_lea.sflag [#allocation4], %s1081
          %s1083 = sand.u32 %s120, 1
          %s1084 = smul.addr %s1083, 32
          %s1085 = scalar_lea.vmem [#allocation7], %s1084
          %1086 = dma.done %s1082, 512
        $region56: #{tpu_custom_call.1} parent=51 // pred_fallthru
          _
      $region52: #{tpu_custom_call.1} parent=5 // pred_fallthru
        _
    $region6: #{tpu_custom_call.1} parent=1 // loop_footer
      %s21 = sadd.s32 1, %s17
    $region7: #{tpu_custom_call.1} parent=1 // loop_footer_branch
      %16 = sbr.rel target = $region3
    $region8: #{tpu_custom_call.1} parent=1 // loop_exit
      _
    %1087 = vsyncpa [#allocation3], 1
    %s1088 = scalar_lea.sflag [#allocation3], 1
    %1089 = vsyncpa %s1088, 1
    %1090 = vsyncpa [#allocation6], 1
    %s1091 = scalar_lea.sflag [#allocation6], 1
    %1092 = vsyncpa %s1091, 1
    %1093 = vsyncpa [#allocation4], 1
    %s1094 = scalar_lea.sflag [#allocation4], 1
    %1095 = vsyncpa %s1094, 1

</llo_original>
